<compile_context>
chip_gen: v5e
topology: v5e:2x2
jax: 0.10.0
libtpu: 0.0.40
codegen_flags: <defaults>
</compile_context>

<pallas_src>
import numpy as np
import jax
import jax.numpy as jnp
from jax.experimental import pallas as pl
from jax.experimental.pallas import tpu as pltpu


def _coalesce_runs(mask_idx):
    """Coalesce the index list into maximal contiguous runs.

    Returns a list of (out_lo, in_lo, length) with static Python ints, where
    out positions [out_lo, out_lo+length) copy from input columns
    [in_lo, in_lo+length).  Order of the mask is preserved (torch x[:, mask]).
    """
    runs = []
    M = int(mask_idx.shape[0])
    start = 0
    for j in range(1, M + 1):
        if j == M or int(mask_idx[j]) != int(mask_idx[j - 1]) + 1:
            runs.append((start, int(mask_idx[start]), j - start))
            start = j
    return runs


def _make_mask_kernel(runs):
    def kernel(x_ref, o_ref):
        # x_ref: VMEM (tile_b, C) logits tile, native layout
        # o_ref: VMEM (tile_b, M) selected-class tile
        # Static lane-slice copies only: no transposes, no scratch, no dynamic
        # indexing; bit-exact (NaN/Inf pass through).
        for out_lo, in_lo, ln in runs:
            o_ref[:, out_lo:out_lo + ln] = x_ref[:, in_lo:in_lo + ln]
    return kernel


def imagenet_x_masking(logits, mask, *, max_tile_b=1024):
    """Pallas equivalent of ImageNetXMaskingLayer.forward: logits[:, mask].

    `mask` must be a host-side constant (numpy / python), matching the spec
    where it is fixed at ImageNetXWrapper construction.  Accepts either a
    boolean mask of length C or an integer index list.
    """
    B, C = logits.shape
    mask = np.asarray(mask)
    if mask.dtype == np.bool_:
        mask_idx = np.nonzero(mask)[0]
    else:
        mask_idx = mask.astype(np.int64).ravel()
    M = int(mask_idx.shape[0])
    if M == 0:
        return jnp.zeros((B, 0), logits.dtype)
    if mask_idx.min() < 0 or mask_idx.max() >= C:
        raise ValueError("mask indices out of range [0, C)")

    runs = _coalesce_runs(mask_idx)

    # Batch tiling: tile_b must be a multiple of 8 or equal B (sublane rule).
    # No padding of B -- Pallas handles the ragged last grid block.
    if B <= max_tile_b:
        half = -(-B // 2)                       # split so v7x uses both cores
        tile_b = min(B, ((half + 7) // 8) * 8)
    else:
        tile_b = max_tile_b                     # multiple of 8
    grid_b = pl.cdiv(B, tile_b)

    return pl.pallas_call(
        _make_mask_kernel(runs),
        out_shape=jax.ShapeDtypeStruct((B, M), logits.dtype),
        grid=(grid_b,),
        in_specs=[pl.BlockSpec((tile_b, C), lambda b: (b, 0))],
        out_specs=pl.BlockSpec((tile_b, M), lambda b: (b, 0)),
        compiler_params=pltpu.CompilerParams(
            dimension_semantics=("parallel",)),
    )(logits)


if __name__ == "__main__":
    # Small shapes: batch of 4 logit vectors over 16 classes, keep 8 classes.
    B, C = 4, 16

    mask_bool = np.zeros(C, dtype=bool)
    mask_bool[[1, 3, 4, 7, 9, 12, 14, 15]] = True
    mask_idx = np.nonzero(mask_bool)[0]

    key = jax.random.PRNGKey(0)
    x = jax.random.normal(key, (B, C), dtype=jnp.float32)
    # Non-selected inf and selected nan must pass through bit-exactly
    # (this is why the gather is a copy, not a one-hot matmul).
    x = x.at[0, 0].set(jnp.inf).at[1, 3].set(jnp.nan)

    out = jax.block_until_ready(imagenet_x_masking(x, mask_bool))

    ref = x[:, jnp.asarray(mask_idx)]        # PyTorch x[:, mask] semantics
    assert out.shape == (B, int(mask_idx.shape[0]))
    np.testing.assert_array_equal(np.asarray(out), np.asarray(ref))
    print("KERNEL_OK")
</pallas_src>

<mosaic_0001>
module attributes {stable_mosaic.version = 11 : i64} {
  func.func @kernel(%arg0: i32, %arg1: memref<4x16xf32, #tpu.memory_space<vmem>>, %arg2: memref<4x8xf32, #tpu.memory_space<vmem>>) attributes {dimension_semantics = [#tpu.dimension_semantics<parallel>], iteration_bounds = array<i64: 1>, scalar_prefetch = 0 : i64, scratch_operands = 0 : i64, tpu.core_type = #tpu.core_type<tc>, window_params = [{transform_indices = @transform_0, window_bounds = array<i64: 4, 16>}, {transform_indices = @transform_1, window_bounds = array<i64: 4, 8>}]} {
    %c0 = arith.constant 0 : index
    %c1 = arith.constant 1 : index
    %0 = vector.load %arg1[%c0, %c1] : memref<4x16xf32, #tpu.memory_space<vmem>>, vector<4x1xf32>
    %c0_0 = arith.constant 0 : index
    %c0_1 = arith.constant 0 : index
    %1 = vector.load %arg2[%c0_0, %c0_1] : memref<4x8xf32, #tpu.memory_space<vmem>>, vector<4x1xf32>
    tpu.vector_store %arg2[%c0_0, %c0_1], %0 {strides = array<i32>} : memref<4x8xf32, #tpu.memory_space<vmem>>, vector<4x1xf32>,
    %c0_2 = arith.constant 0 : index
    %c3 = arith.constant 3 : index
    %2 = vector.load %arg1[%c0_2, %c3] : memref<4x16xf32, #tpu.memory_space<vmem>>, vector<4x2xf32>
    %c0_3 = arith.constant 0 : index
    %c1_4 = arith.constant 1 : index
    %3 = vector.load %arg2[%c0_3, %c1_4] : memref<4x8xf32, #tpu.memory_space<vmem>>, vector<4x2xf32>
    tpu.vector_store %arg2[%c0_3, %c1_4], %2 {strides = array<i32>} : memref<4x8xf32, #tpu.memory_space<vmem>>, vector<4x2xf32>,
    %c0_5 = arith.constant 0 : index
    %c7 = arith.constant 7 : index
    %4 = vector.load %arg1[%c0_5, %c7] : memref<4x16xf32, #tpu.memory_space<vmem>>, vector<4x1xf32>
    %c0_6 = arith.constant 0 : index
    %c3_7 = arith.constant 3 : index
    %5 = vector.load %arg2[%c0_6, %c3_7] : memref<4x8xf32, #tpu.memory_space<vmem>>, vector<4x1xf32>
    tpu.vector_store %arg2[%c0_6, %c3_7], %4 {strides = array<i32>} : memref<4x8xf32, #tpu.memory_space<vmem>>, vector<4x1xf32>,
    %c0_8 = arith.constant 0 : index
    %c9 = arith.constant 9 : index
    %6 = vector.load %arg1[%c0_8, %c9] : memref<4x16xf32, #tpu.memory_space<vmem>>, vector<4x1xf32>
    %c0_9 = arith.constant 0 : index
    %c4 = arith.constant 4 : index
    %7 = vector.load %arg2[%c0_9, %c4] : memref<4x8xf32, #tpu.memory_space<vmem>>, vector<4x1xf32>
    tpu.vector_store %arg2[%c0_9, %c4], %6 {strides = array<i32>} : memref<4x8xf32, #tpu.memory_space<vmem>>, vector<4x1xf32>,
    %c0_10 = arith.constant 0 : index
    %c12 = arith.constant 12 : index
    %8 = vector.load %arg1[%c0_10, %c12] : memref<4x16xf32, #tpu.memory_space<vmem>>, vector<4x1xf32>
    %c0_11 = arith.constant 0 : index
    %c5 = arith.constant 5 : index
    %9 = vector.load %arg2[%c0_11, %c5] : memref<4x8xf32, #tpu.memory_space<vmem>>, vector<4x1xf32>
    tpu.vector_store %arg2[%c0_11, %c5], %8 {strides = array<i32>} : memref<4x8xf32, #tpu.memory_space<vmem>>, vector<4x1xf32>,
    %c0_12 = arith.constant 0 : index
    %c14 = arith.constant 14 : index
    %10 = vector.load %arg1[%c0_12, %c14] : memref<4x16xf32, #tpu.memory_space<vmem>>, vector<4x2xf32>
    %c0_13 = arith.constant 0 : index
    %c6 = arith.constant 6 : index
    %11 = vector.load %arg2[%c0_13, %c6] : memref<4x8xf32, #tpu.memory_space<vmem>>, vector<4x2xf32>
    tpu.vector_store %arg2[%c0_13, %c6], %10 {strides = array<i32>} : memref<4x8xf32, #tpu.memory_space<vmem>>, vector<4x2xf32>,
    return
  }
  func.func @transform_0(%arg0: i32) -> (i32, i32) {
    %c0_i32 = arith.constant 0 : i32
    %c0_i32_0 = arith.constant 0 : i32
    return %arg0, %c0_i32 : i32, i32
  }
  func.func @transform_1(%arg0: i32) -> (i32, i32) {
    %c0_i32 = arith.constant 0 : i32
    %c0_i32_0 = arith.constant 0 : i32
    return %arg0, %c0_i32 : i32, i32
  }
}

</mosaic_0001>

<llo_original>
// kernel: tpu_custom_call.1
$region0: #{tpu_custom_call.1}
  #allocation0 [shape = 'u32[]', space=smem, size = 0x4, offset = 0x4, fixed_abs, tag = 'smem constant byte address 0x4 - core index']
  #allocation1 [shape = 'u32[72,128]{1,0:T(1,128)}', space=vmem, size = 0x9000, scoped, tag = 'internal scratch']
  %s0 = inlined_call_operand.hbm [shape: f32[4,16], index: 0, kind: input, shape index: {}]
  %s1 = inlined_call_operand.hbm [shape: f32[4,8], index: 1, kind: output, shape index: {}]
  %s2 = sld [smem:[#allocation0]]
  $region18: #{tpu_custom_call.1} parent=0
    _
  %s4 = ssub.s32 1, %s2
  %s5 = scalar_select 0, %s4, %s2
  $region1: #{tpu_custom_call.1} parent=0
    #allocation2 [shape = 'u8[2048]{0}', space=vmem, size = 0x800, scoped, tag = 'input window, operand 0, single buffered']
    #allocation3 [shape = 's32[1]{0}', space=sflag, size = 0x4, scoped, tag = 'scoped memory for tpu_custom_call.1']
    #allocation4 [shape = 's32[1]{0}', space=sflag, size = 0x4, scoped, tag = 'scoped memory for tpu_custom_call.1']
    #allocation5 [shape = 'u8[2048]{0}', space=vmem, size = 0x800, scoped, tag = 'output window, operand 0, single buffered']
    %6 = vsyncpa [#allocation3], 0
    %7 = vsyncpa [#allocation4], 0
    // Predicated region
    $region2: #{tpu_custom_call.1} parent=1 // pred_check
      _
    $region3: #{tpu_custom_call.1} parent=1 // pred_check_branch
      %9 = sbr.rel (0) target = $region5
    $region4: #{tpu_custom_call.1} parent=1 // pred_region
      %11 = vsyncadd [#allocation3], 0
      %s13 = sshll.u32 %s0, 4
      %s14 = int_to_ptr.hbm [resolvable:$true] %s13
      %s15 = sshll.u32 [#allocation2], 4
      %s16 = int_to_ptr.vmem [resolvable:$true] %s15
      %18 = dma.hbm_to_vmem [thread:$0]  %s14, 64, %s16, [#allocation3]
    $region5: #{tpu_custom_call.1} parent=1 // pred_fallthru
      _
    // Predicated region
    $region6: #{tpu_custom_call.1} parent=1 // pred_check
      _
    $region7: #{tpu_custom_call.1} parent=1 // pred_check_branch
      %20 = sbr.rel (0) target = $region9
    $region8: #{tpu_custom_call.1} parent=1 // pred_region
      %22 = dma.done [#allocation3], 64
    $region9: #{tpu_custom_call.1} parent=1 // pred_fallthru
      _
    %v23 = vld [vmem:[#allocation2] sm:$0xf]
    %25 = vrot.lane.b32.xlu0 %v23, 127
    %v26 = vpop.permute.xlu0 %25
    %vm28 = vcmask 3072
    %29 = vst.msk [vmem:[#allocation5] sm:$0xf] %vm28, %v26
    %v30 = vld [vmem:[#allocation2] sm:$0xf]
    %32 = vrot.lane.b32.xlu0 %v30, 126
    %v33 = vpop.permute.xlu0 %32
    %vm35 = vcmask 19464
    %36 = vst.msk [vmem:[#allocation5] sm:$0xf] %vm35, %v33
    %v37 = vld [vmem:[#allocation2] sm:$0xf]
    %39 = vrot.lane.b32.xlu0 %v37, 124
    %v40 = vpop.permute.xlu0 %39
    %vm42 = vcmask 27672
    %43 = vst.msk [vmem:[#allocation5] sm:$0xf] %vm42, %v40
    %v44 = vld [vmem:[#allocation2] sm:$0xf]
    %46 = vrot.lane.b32.xlu0 %v44, 123
    %v47 = vpop.permute.xlu0 %46
    %vm49 = vcmask 35872
    %50 = vst.msk [vmem:[#allocation5] sm:$0xf] %vm49, %v47
    %v51 = vld [vmem:[#allocation2] sm:$0xf]
    %53 = vrot.lane.b32.xlu0 %v51, 121
    %v54 = vpop.permute.xlu0 %53
    %vm56 = vcmask 44072
    %57 = vst.msk [vmem:[#allocation5] sm:$0xf] %vm56, %v54
    %v58 = vld [vmem:[#allocation2] sm:$0xf]
    %60 = vrot.lane.b32.xlu0 %v58, 120
    %v61 = vpop.permute.xlu0 %60
    %vm63 = vcmask 60464
    %64 = vst.msk [vmem:[#allocation5] sm:$0xf] %vm63, %v61
    // Predicated region
    $region10: #{tpu_custom_call.1} parent=1 // pred_check
      _
    $region11: #{tpu_custom_call.1} parent=1 // pred_check_branch
      %66 = sbr.rel (0) target = $region13
    $region12: #{tpu_custom_call.1} parent=1 // pred_region
      %68 = vsyncadd [#allocation4], 0
      %s70 = sshll.u32 [#allocation5], 4
      %s71 = int_to_ptr.vmem [resolvable:$true] %s70
      %s72 = sshll.u32 %s1, 4
      %s73 = int_to_ptr.hbm [resolvable:$true] %s72
      %75 = dma.vmem_to_hbm [thread:$0]  %s71, 64, %s73, [#allocation4]
    $region13: #{tpu_custom_call.1} parent=1 // pred_fallthru
      _
    // Predicated region
    $region14: #{tpu_custom_call.1} parent=1 // pred_check
      _
    $region15: #{tpu_custom_call.1} parent=1 // pred_check_branch
      %77 = sbr.rel (0) target = $region17
    $region16: #{tpu_custom_call.1} parent=1 // pred_region
      %79 = dma.done [#allocation4], 64
    $region17: #{tpu_custom_call.1} parent=1 // pred_fallthru
      _
    %80 = vsyncpa [#allocation3], 1
    %81 = vsyncpa [#allocation4], 1

</llo_original>
